<compile_context>
chip_gen: v6e
topology: v6e:2x2x1
jax: 0.10.0
libtpu: 0.0.40
codegen_flags: <defaults>
</compile_context>

<pallas_src>
import functools

import jax
import jax.numpy as jnp
from jax.experimental import pallas as pl
from jax.experimental.pallas import tpu as pltpu

LANES = 128          # lane width; hidden (24) and fc-output lanes padded to this
HIDDEN = 24          # logical hidden size of the PyTorch DQN


def dqn_kernel(x_ref, w_ref, b_ref, out_ref, xpad_ref):
    # x_ref   : (TB, S)     f32  — real (unpadded) state features
    # w_ref   : (128, 384)  bf16 — [W1_pad | W2_pad | W3_pad], each [128, 128]
    # b_ref   : (1, 384)    f32  — [b1_pad | b2_pad | b3_pad]
    # out_ref : (TB, A)     f32  — real (unpadded) Q-values
    # xpad_ref: (TB, 128)   bf16 scratch — zero-filled, lanes [0:S) hold the state
    S = x_ref.shape[1]
    A = out_ref.shape[1]

    # Build a lane-aligned bf16 activation tile. Padded lanes are exact zeros
    # (and multiply zero weight rows), so results match the unpadded math.
    xpad_ref[...] = jnp.zeros_like(xpad_ref)
    xpad_ref[:, 0:S] = x_ref[...].astype(xpad_ref.dtype)
    x = xpad_ref[...]

    # fc1 + ReLU   (bf16 MXU inputs, f32 accumulation, f32 elementwise)
    h1 = jnp.dot(x, w_ref[:, 0:LANES], preferred_element_type=jnp.float32)
    h1 = jnp.maximum(h1 + b_ref[:, 0:LANES], 0.0)

    # fc2 + ReLU
    h2 = jnp.dot(h1.astype(jnp.bfloat16), w_ref[:, LANES:2 * LANES],
                 preferred_element_type=jnp.float32)
    h2 = jnp.maximum(h2 + b_ref[:, LANES:2 * LANES], 0.0)

    # fc3 (no activation) — store only the real action lanes.
    q = jnp.dot(h2.astype(jnp.bfloat16), w_ref[:, 2 * LANES:3 * LANES],
                preferred_element_type=jnp.float32)
    q = q + b_ref[:, 2 * LANES:3 * LANES]
    out_ref[...] = q[:, 0:A].astype(out_ref.dtype)


def _round_up(x, m):
    return -(-x // m) * m


@functools.partial(jax.jit, static_argnames=("action_size", "tb"))
def dqn_forward(x, w_packed, b_packed, *, action_size, tb=2048):
    """x: [B, state_size] f32. w_packed: [128, 384] bf16. b_packed: [1, 384] f32."""
    B, S = x.shape
    assert S <= LANES, "state_size must be <= 128 for this packing"

    # Batch tile: multiple of 8 sublanes, <= tb, and capped so the grid keeps at
    # least 2 steps when the batch allows (double-buffer overlap + v7x megacore).
    B8 = _round_up(B, 8)
    tb_cap = _round_up(B8 // 2, 8) if B8 >= 16 else B8
    TB = int(min(tb, tb_cap))
    B_pad = _round_up(B, TB)

    # Only the (cheap) batch-row pad remains; state dim is passed at full width.
    x_pad = jnp.pad(x, ((0, B_pad - B), (0, 0))) if B_pad != B else x

    out = pl.pallas_call(
        dqn_kernel,
        out_shape=jax.ShapeDtypeStruct((B_pad, action_size), jnp.float32),
        grid=(B_pad // TB,),
        in_specs=[
            pl.BlockSpec((TB, S), lambda i: (i, 0)),              # states (pipelined)
            pl.BlockSpec((LANES, 3 * LANES), lambda i: (0, 0)),   # bf16 weight slab (resident)
            pl.BlockSpec((1, 3 * LANES), lambda i: (0, 0)),       # f32 bias slab (resident)
        ],
        out_specs=pl.BlockSpec((TB, action_size), lambda i: (i, 0)),
        scratch_shapes=[pltpu.VMEM((TB, LANES), jnp.bfloat16)],
        compiler_params=pltpu.CompilerParams(
            dimension_semantics=("parallel",),  # batch axis -> 2 TCs on v7x
        ),
    )(x_pad, w_packed, b_packed)

    return out[:B] if B_pad != B else out


def init_params(key, state_size, action_size, hidden=HIDDEN):
    """PyTorch nn.Linear default init U(-1/sqrt(fan_in), 1/sqrt(fan_in)).
    Weights stored as [in, out] (transposed vs PyTorch) and packed into one
    zero-padded bf16 [128, 3*128] slab + one f32 [1, 3*128] bias row."""
    def linear(k, fan_in, fan_out):
        kw, kb = jax.random.split(k)
        bound = 1.0 / float(fan_in) ** 0.5
        w = jax.random.uniform(kw, (fan_in, fan_out), jnp.float32, -bound, bound)
        b = jax.random.uniform(kb, (1, fan_out), jnp.float32, -bound, bound)
        return w, b

    k1, k2, k3 = jax.random.split(key, 3)
    w1, b1 = linear(k1, state_size, hidden)
    w2, b2 = linear(k2, hidden, hidden)
    w3, b3 = linear(k3, hidden, action_size)

    w_packed = jnp.zeros((LANES, 3 * LANES), jnp.bfloat16)
    w_packed = w_packed.at[:state_size, 0:hidden].set(w1.astype(jnp.bfloat16))
    w_packed = w_packed.at[:hidden, LANES:LANES + hidden].set(w2.astype(jnp.bfloat16))
    w_packed = w_packed.at[:hidden, 2 * LANES:2 * LANES + action_size].set(
        w3.astype(jnp.bfloat16))

    b_packed = jnp.zeros((1, 3 * LANES), jnp.float32)
    b_packed = b_packed.at[:, 0:hidden].set(b1)
    b_packed = b_packed.at[:, LANES:LANES + hidden].set(b2)
    b_packed = b_packed.at[:, 2 * LANES:2 * LANES + action_size].set(b3)

    return {
        "w_packed": w_packed, "b_packed": b_packed,
        "state_size": state_size, "action_size": action_size,
        # Unpacked f32 copies kept only for the pure-JAX reference check.
        "w1": w1, "b1": b1, "w2": w2, "b2": b2, "w3": w3, "b3": b3,
    }


if __name__ == "__main__":
    key = jax.random.PRNGKey(0)
    k_params, k_x = jax.random.split(key)

    # Typical DQN replay mini-batch (small); gives a 2-step grid at TB=32.
    batch = 64
    state_size = 4      # e.g. CartPole observation dim
    action_size = 2     # e.g. CartPole action dim

    params = init_params(k_params, state_size, action_size)
    x = jax.random.normal(k_x, (batch, state_size), jnp.float32)

    out = jax.block_until_ready(
        dqn_forward(x, params["w_packed"], params["b_packed"],
                    action_size=action_size))

    # Reference in plain JAX with the same bf16-input / f32-accumulate math.
    bf16, f32 = jnp.bfloat16, jnp.float32
    h = jnp.maximum(jnp.dot(x.astype(bf16), params["w1"].astype(bf16),
                            preferred_element_type=f32) + params["b1"], 0.0)
    h = jnp.maximum(jnp.dot(h.astype(bf16), params["w2"].astype(bf16),
                            preferred_element_type=f32) + params["b2"], 0.0)
    ref = jnp.dot(h.astype(bf16), params["w3"].astype(bf16),
                  preferred_element_type=f32) + params["b3"]

    assert out.shape == (batch, action_size)
    assert jnp.allclose(out, ref, atol=1e-3, rtol=1e-3), "mismatch vs reference"

    print("KERNEL_OK")
</pallas_src>

<mosaic_0001>
module attributes {stable_mosaic.version = 11 : i64} {
  func.func @dqn_kernel(%arg0: i32, %arg1: memref<32x4xf32, #tpu.memory_space<vmem>>, %arg2: memref<128x384xbf16, #tpu.memory_space<vmem>>, %arg3: memref<1x384xf32, #tpu.memory_space<vmem>>, %arg4: memref<32x2xf32, #tpu.memory_space<vmem>>, %arg5: memref<32x128xbf16, #tpu.memory_space<vmem>>) attributes {dimension_semantics = [#tpu.dimension_semantics<parallel>], iteration_bounds = array<i64: 2>, scalar_prefetch = 0 : i64, scratch_operands = 1 : i64, tpu.core_type = #tpu.core_type<tc>, window_params = [{transform_indices = @transform_0, window_bounds = array<i64: 32, 4>}, {pipeline_mode = #tpu.pipeline_mode<synchronous>, transform_indices = @transform_1, window_bounds = array<i64: 128, 384>}, {pipeline_mode = #tpu.pipeline_mode<synchronous>, transform_indices = @transform_2, window_bounds = array<i64: 1, 384>}, {transform_indices = @transform_3, window_bounds = array<i64: 32, 2>}]} {
    %cst = arith.constant 0.000000e+00 : bf16
    %0 = vector.broadcast %cst : bf16 to vector<32x128xbf16>
    %c0 = arith.constant 0 : index
    %c0_0 = arith.constant 0 : index
    %1 = vector.load %arg5[%c0, %c0_0] : memref<32x128xbf16, #tpu.memory_space<vmem>>, vector<32x128xbf16>
    tpu.vector_store %arg5[%c0, %c0_0], %0 {strides = array<i32>} : memref<32x128xbf16, #tpu.memory_space<vmem>>, vector<32x128xbf16>,
    %c0_1 = arith.constant 0 : index
    %c0_2 = arith.constant 0 : index
    %2 = vector.load %arg1[%c0_1, %c0_2] : memref<32x4xf32, #tpu.memory_space<vmem>>, vector<32x4xf32>
    %3 = arith.truncf %2 : vector<32x4xf32> to vector<32x4xbf16>
    %c0_3 = arith.constant 0 : index
    %c0_4 = arith.constant 0 : index
    %4 = vector.load %arg5[%c0_3, %c0_4] : memref<32x128xbf16, #tpu.memory_space<vmem>>, vector<32x4xbf16>
    tpu.vector_store %arg5[%c0_3, %c0_4], %3 {strides = array<i32>} : memref<32x128xbf16, #tpu.memory_space<vmem>>, vector<32x4xbf16>,
    %c0_5 = arith.constant 0 : index
    %c0_6 = arith.constant 0 : index
    %5 = vector.load %arg5[%c0_5, %c0_6] : memref<32x128xbf16, #tpu.memory_space<vmem>>, vector<32x128xbf16>
    %c0_7 = arith.constant 0 : index
    %c0_8 = arith.constant 0 : index
    %6 = vector.load %arg2[%c0_7, %c0_8] : memref<128x384xbf16, #tpu.memory_space<vmem>>, vector<128x128xbf16>
    %cst_9 = arith.constant dense<0.000000e+00> : vector<32x128xf32>
    %7 = tpu.matmul %5, %6, %cst_9 {dimension_numbers = #tpu.dot_dimension_numbers<[1], [0], [0], [1], [0, 0, 1, 1], [], []>} : vector<32x128xbf16>, vector<128x128xbf16>, vector<32x128xf32> -> vector<32x128xf32>
    %c0_10 = arith.constant 0 : index
    %c0_11 = arith.constant 0 : index
    %8 = vector.load %arg3[%c0_10, %c0_11] : memref<1x384xf32, #tpu.memory_space<vmem>>, vector<1x128xf32>
    %9 = vector.broadcast %8 : vector<1x128xf32> to vector<32x128xf32>
    %10 = arith.addf %7, %9 : vector<32x128xf32>
    %cst_12 = arith.constant 0.000000e+00 : f32
    %11 = vector.broadcast %cst_12 : f32 to vector<32x128xf32>
    %12 = arith.maximumf %10, %11 : vector<32x128xf32>
    %13 = arith.truncf %12 : vector<32x128xf32> to vector<32x128xbf16>
    %c0_13 = arith.constant 0 : index
    %c128 = arith.constant 128 : index
    %14 = vector.load %arg2[%c0_13, %c128] : memref<128x384xbf16, #tpu.memory_space<vmem>>, vector<128x128xbf16>
    %cst_14 = arith.constant dense<0.000000e+00> : vector<32x128xf32>
    %15 = tpu.matmul %13, %14, %cst_14 {dimension_numbers = #tpu.dot_dimension_numbers<[1], [0], [0], [1], [0, 0, 1, 1], [], []>} : vector<32x128xbf16>, vector<128x128xbf16>, vector<32x128xf32> -> vector<32x128xf32>
    %c0_15 = arith.constant 0 : index
    %c128_16 = arith.constant 128 : index
    %16 = vector.load %arg3[%c0_15, %c128_16] : memref<1x384xf32, #tpu.memory_space<vmem>>, vector<1x128xf32>
    %17 = vector.broadcast %16 : vector<1x128xf32> to vector<32x128xf32>
    %18 = arith.addf %15, %17 : vector<32x128xf32>
    %cst_17 = arith.constant 0.000000e+00 : f32
    %19 = vector.broadcast %cst_17 : f32 to vector<32x128xf32>
    %20 = arith.maximumf %18, %19 : vector<32x128xf32>
    %21 = arith.truncf %20 : vector<32x128xf32> to vector<32x128xbf16>
    %c0_18 = arith.constant 0 : index
    %c256 = arith.constant 256 : index
    %22 = vector.load %arg2[%c0_18, %c256] : memref<128x384xbf16, #tpu.memory_space<vmem>>, vector<128x128xbf16>
    %cst_19 = arith.constant dense<0.000000e+00> : vector<32x128xf32>
    %23 = tpu.matmul %21, %22, %cst_19 {dimension_numbers = #tpu.dot_dimension_numbers<[1], [0], [0], [1], [0, 0, 1, 1], [], []>} : vector<32x128xbf16>, vector<128x128xbf16>, vector<32x128xf32> -> vector<32x128xf32>
    %c0_20 = arith.constant 0 : index
    %c256_21 = arith.constant 256 : index
    %24 = vector.load %arg3[%c0_20, %c256_21] : memref<1x384xf32, #tpu.memory_space<vmem>>, vector<1x128xf32>
    %25 = vector.broadcast %24 : vector<1x128xf32> to vector<32x128xf32>
    %26 = arith.addf %23, %25 : vector<32x128xf32>
    %27 = vector.extract_strided_slice %26 {offsets = [0, 0], sizes = [32, 2], strides = [1, 1]} : vector<32x128xf32> to vector<32x2xf32>
    %c0_22 = arith.constant 0 : index
    %c0_23 = arith.constant 0 : index
    %28 = vector.load %arg4[%c0_22, %c0_23] : memref<32x2xf32, #tpu.memory_space<vmem>>, vector<32x2xf32>
    tpu.vector_store %arg4[%c0_22, %c0_23], %27 {strides = array<i32>} : memref<32x2xf32, #tpu.memory_space<vmem>>, vector<32x2xf32>,
    return
  }
  func.func @transform_0(%arg0: i32) -> (i32, i32) {
    %c0_i32 = arith.constant 0 : i32
    %c0_i32_0 = arith.constant 0 : i32
    return %arg0, %c0_i32 : i32, i32
  }
  func.func @transform_1(%arg0: i32) -> (i32, i32) {
    %c0_i32 = arith.constant 0 : i32
    %c0_i32_0 = arith.constant 0 : i32
    %c0_i32_1 = arith.constant 0 : i32
    return %c0_i32, %c0_i32_0 : i32, i32
  }
  func.func @transform_2(%arg0: i32) -> (i32, i32) {
    %c0_i32 = arith.constant 0 : i32
    %c0_i32_0 = arith.constant 0 : i32
    %c0_i32_1 = arith.constant 0 : i32
    return %c0_i32, %c0_i32_0 : i32, i32
  }
  func.func @transform_3(%arg0: i32) -> (i32, i32) {
    %c0_i32 = arith.constant 0 : i32
    %c0_i32_0 = arith.constant 0 : i32
    return %arg0, %c0_i32 : i32, i32
  }
}

</mosaic_0001>

<llo_original>
// kernel: dqn_forward.1
$region0: #{dqn_forward.1}
  #allocation0 [shape = 'u32[]', space=smem, size = 0x4, offset = 0x4, fixed_abs, tag = 'smem constant byte address 0x4 - core index']
  #allocation1 [shape = 'u32[144,128]{1,0:T(1,128)}', space=vmem, size = 0x12000, scoped, tag = 'internal scratch']
  #allocation2 [shape = 'bf16[32,128]{1,0:T(8,128)(2,1)}', space=vmem, size = 0x2000, scoped, tag = 'scratch operand']
  %s0 = inlined_call_operand.vmem [shape: f32[64,4], index: 0, kind: input, shape index: {}]
  %s1 = inlined_call_operand.hbm [shape: bf16[128,384], index: 1, kind: input, shape index: {}]
  %s2 = inlined_call_operand.vmem [shape: f32[1,384], index: 2, kind: input, shape index: {}]
  %s3 = inlined_call_operand.vmem [shape: f32[64,2], index: 3, kind: output, shape index: {}]
  %s4 = sld [smem:[#allocation0]]
  $region49: #{dqn_forward.1} parent=0
    _
  %s6 = ssub.s32 1, %s4
  %s7 = scalar_select 0, %s6, %s4
  $region1: #{dqn_forward.1} parent=0
    #allocation3 [shape = 'u8[98304]{0}', space=vmem, size = 0x18000, scoped, tag = 'input window, operand 1, single buffered']
    #allocation4 [shape = 's32[2]{0}', space=sflag, size = 0x8, scoped, tag = 'scoped memory for dqn_forward.1']
    %8 = vsyncpa [#allocation4], 0
    loop: start=0, step=1, limit=4
    $region2: #{dqn_forward.1} parent=1 // loop_pre_header
      _
    $region3: #{dqn_forward.1} parent=1 // loop_header
      %s10 = sphi 0, %s14
      %p11 = scmp.ge.s32.totalorder %s10, 4
      %s20 = sphi 0, %s22
      %s23 = sphi 0, %s20
      %s24 = sphi 0, %s23
      %s40 = sphi 0, %s24
      %s44 = sphi 0, %s44
      %s46 = sphi 0, %s44
      %s47 = sphi 0, %s46
      %s61 = sphi 0, %s47
      %s65 = sphi 0, %s65
      %s67 = sphi 0, %s65
      %s68 = sphi 0, %s67
      %s82 = sphi 0, %s68
      %s88 = sphi 0, %s90
      %s91 = sphi 0, %s88
      %s92 = sphi 0, %s91
      %s108 = sphi 0, %s92
    $region4: #{dqn_forward.1} parent=1 // loop_header_branch
      %13 = sbr.rel (%p11) target = $region8
    $region5: #{dqn_forward.1} parent=1 // loop_body
      %s15 = ssub.s32 %s10, 1
      %s16 = ssub.s32 %s10, 2
      %s17 = sadd.s32 %s10, 1
      %s18 = ssub.s32 %s10, %s17
      %p19 = scmp.eq.s32.totalorder %s18, 0
      %s21 = sadd.s32 %s20, 1
      %s22 = scalar_select %p19, %s20, %s21
      %p25 = pneg %p19
      %p26 = scmp.eq.s32.totalorder %s10, 1
      %p27 = por %p25, %p26
      %p28 = scmp.ne.s32.totalorder %s20, %s23
      %p29 = scmp.eq.s32.totalorder %s10, 0
      %p30 = por %p28, %p29
      %p31 = scmp.ne.s32.totalorder %s20, %s23
      %p32 = scmp.eq.s32.totalorder %s15, 1
      %p33 = por %p31, %p32
      %p34 = scmp.ne.s32.totalorder %s23, %s24
      %p35 = scmp.eq.s32.totalorder %s15, 0
      %p36 = por %p34, %p35
      %p37 = scmp.ne.s32.totalorder %s23, %s24
      %p38 = scmp.eq.s32.totalorder %s16, 1
      %p39 = por %p37, %p38
      %p41 = scmp.ne.s32.totalorder %s24, %s40
      %p42 = scmp.eq.s32.totalorder %s16, 0
      %p43 = por %p41, %p42
      %s45 = sadd.s32 %s44, 1
      %p48 = scmp.eq.s32.totalorder %s10, 1
      %p49 = scmp.ne.s32.totalorder %s44, %s46
      %p50 = scmp.eq.s32.totalorder %s10, 0
      %p51 = por %p49, %p50
      %p52 = scmp.ne.s32.totalorder %s44, %s46
      %p53 = scmp.eq.s32.totalorder %s15, 1
      %p54 = por %p52, %p53
      %p55 = scmp.ne.s32.totalorder %s46, %s47
      %p56 = scmp.eq.s32.totalorder %s15, 0
      %p57 = por %p55, %p56
      %p58 = scmp.ne.s32.totalorder %s46, %s47
      %p59 = scmp.eq.s32.totalorder %s16, 1
      %p60 = por %p58, %p59
      %p62 = scmp.ne.s32.totalorder %s47, %s61
      %p63 = scmp.eq.s32.totalorder %s16, 0
      %p64 = por %p62, %p63
      %s66 = sadd.s32 %s65, 1
      %p69 = scmp.eq.s32.totalorder %s10, 1
      %p70 = scmp.ne.s32.totalorder %s65, %s67
      %p71 = scmp.eq.s32.totalorder %s10, 0
      %p72 = por %p70, %p71
      %p73 = scmp.ne.s32.totalorder %s65, %s67
      %p74 = scmp.eq.s32.totalorder %s15, 1
      %p75 = por %p73, %p74
      %p76 = scmp.ne.s32.totalorder %s67, %s68
      %p77 = scmp.eq.s32.totalorder %s15, 0
      %p78 = por %p76, %p77
      %p79 = scmp.ne.s32.totalorder %s67, %s68
      %p80 = scmp.eq.s32.totalorder %s16, 1
      %p81 = por %p79, %p80
      %p83 = scmp.ne.s32.totalorder %s68, %s82
      %p84 = scmp.eq.s32.totalorder %s16, 0
      %p85 = por %p83, %p84
      %s86 = ssub.s32 %s10, %s17
      %p87 = scmp.eq.s32.totalorder %s86, 0
      %s89 = sadd.s32 %s88, 1
      %s90 = scalar_select %p87, %s88, %s89
      %p93 = pneg %p87
      %p94 = scmp.eq.s32.totalorder %s10, 1
      %p95 = por %p93, %p94
      %p96 = scmp.ne.s32.totalorder %s88, %s91
      %p97 = scmp.eq.s32.totalorder %s10, 0
      %p98 = por %p96, %p97
      %p99 = scmp.ne.s32.totalorder %s88, %s91
      %p100 = scmp.eq.s32.totalorder %s15, 1
      %p101 = por %p99, %p100
      %p102 = scmp.ne.s32.totalorder %s91, %s92
      %p103 = scmp.eq.s32.totalorder %s15, 0
      %p104 = por %p102, %p103
      %p105 = scmp.ne.s32.totalorder %s91, %s92
      %p106 = scmp.eq.s32.totalorder %s16, 1
      %p107 = por %p105, %p106
      %p109 = scmp.ne.s32.totalorder %s92, %s108
      %p110 = scmp.eq.s32.totalorder %s16, 0
      %p111 = por %p109, %p110
      %p112 = scmp.le.s32.totalorder 1, %s10
      %p113 = scmp.lt.s32.totalorder %s10, 3
      %p114 = pnand %p112, %p113
      %p115 = pneg %p114
      // Predicated region
      $region9: #{dqn_forward.1} parent=5 // pred_check
        _
      $region10: #{dqn_forward.1} parent=5 // pred_check_branch
        %117 = sbr.rel (%p114) target = $region12
      $region11: #{dqn_forward.1} parent=5 // pred_region
        %s118 = ssub.s32 %s10, 1
        // Predicated region
        $region13: #{dqn_forward.1} parent=11 // pred_check
          %p119 = pneg %p57
        $region14: #{dqn_forward.1} parent=11 // pred_check_branch
          %121 = sbr.rel (%p119) target = $region16
        $region15: #{dqn_forward.1} parent=11 // pred_region
          %s123 = ssub.s32 3072, 3072
          %124 = vsyncadd [#allocation4], %s123
          %s125 = sshll.u32 [#allocation3], 4
          %s126 = int_to_ptr.vmem [resolvable:$true] %s125
          %131 = dma.hbm_to_vmem [thread:$0]  %s1, 3072, %s126, [#allocation4], 192, 192, 12
        $region16: #{dqn_forward.1} parent=11 // pred_fallthru
          _
        // Predicated region
        $region17: #{dqn_forward.1} parent=11 // pred_check
          %p132 = pneg %p78
        $region18: #{dqn_forward.1} parent=11 // pred_check_branch
          %134 = sbr.rel (%p132) target = $region20
        $region19: #{dqn_forward.1} parent=11 // pred_region
          _
        $region20: #{dqn_forward.1} parent=11 // pred_fallthru
          _
      $region12: #{dqn_forward.1} parent=5 // pred_fallthru
        _
      %p135 = scmp.lt.s32.totalorder %s10, 2
      // Predicated region
      $region21: #{dqn_forward.1} parent=5 // pred_check
        %p136 = pneg %p135
      $region22: #{dqn_forward.1} parent=5 // pred_check_branch
        %138 = sbr.rel (%p136) target = $region24
      $region23: #{dqn_forward.1} parent=5 // pred_region
        // Predicated region
        $region25: #{dqn_forward.1} parent=23 // pred_check
          %p139 = pneg %p30
        $region26: #{dqn_forward.1} parent=23 // pred_check_branch
          %141 = sbr.rel (%p139) target = $region28
        $region27: #{dqn_forward.1} parent=23 // pred_region
          %s142 = smul.u32 4, %s10
          %p143 = scmp.lt.s32.totalorder %s142, 7
          %s144 = scalar_select %p143, %s142, 7
          %s145 = smul.addr %s144, 8
          %s146 = scalar_lea.vmem %s0, %s145
          %s147 = smul.u32 4, %s10
        $region28: #{dqn_forward.1} parent=23 // pred_fallthru
          _
      $region24: #{dqn_forward.1} parent=5 // pred_fallthru
        _
      %p148 = scmp.le.s32.totalorder 1, %s10
      %p149 = scmp.lt.s32.totalorder %s10, 3
      %p150 = pnand %p148, %p149
      %p151 = pneg %p150
      // Predicated region
      $region29: #{dqn_forward.1} parent=5 // pred_check
        _
      $region30: #{dqn_forward.1} parent=5 // pred_check_branch
        %153 = sbr.rel (%p150) target = $region32
      $region31: #{dqn_forward.1} parent=5 // pred_region
        %s154 = ssub.s32 %s10, 1
        // Predicated region
        $region33: #{dqn_forward.1} parent=31 // pred_check
          %p155 = pneg %p57
        $region34: #{dqn_forward.1} parent=31 // pred_check_branch
          %157 = sbr.rel (%p155) target = $region36
        $region35: #{dqn_forward.1} parent=31 // pred_region
          %158 = dma.done [#allocation4], 3072
        $region36: #{dqn_forward.1} parent=31 // pred_fallthru
          _
        %s159 = smul.u32 4, %s15
        %p160 = scmp.lt.s32.totalorder %s159, 7
        %s161 = scalar_select %p160, %s159, 7
        %s162 = smul.addr %s161, 8
        %s163 = scalar_lea.vmem %s0, %s162
        %p164 = pneg %p36
        %p165 = pneg %p33
        %p166 = pneg %p57
        %p167 = pneg %p54
        %p168 = pneg %p78
        %p169 = pneg %p75
        %p170 = pneg %p104
        %p171 = pneg %p101
        %s172 = smul.u32 4, %s15
        %p173 = scmp.lt.s32.totalorder %s172, 7
        %s174 = scalar_select %p173, %s172, 7
        %s175 = smul.addr %s174, 8
        %s176 = scalar_lea.vmem %s3, %s175
        %s177 = smul.u32 4, %s15
        %p178 = scmp.lt.s32.totalorder %s177, 7
        %s179 = scalar_select %p178, %s177, 7
        %s180 = smul.addr %s179, 8
        %s181 = scalar_lea.vmem %s0, %s180
        %s182 = smul.u32 4, %s15
        %s183 = smul.u32 4, %s15
        %p184 = scmp.lt.s32.totalorder %s183, 7
        %s185 = scalar_select %p184, %s183, 7
        %s186 = smul.addr %s185, 8
        %s187 = scalar_lea.vmem %s3, %s186
        %s188 = smul.u32 4, %s15
        %190 = vst [vmem:[#allocation2] sm:$0xf] 0
        %191 = vst [vmem:[#allocation2 + $0x4] sm:$0xf] 0
        %192 = vst [vmem:[#allocation2 + $0x8] sm:$0xf] 0
        %193 = vst [vmem:[#allocation2 + $0xc] sm:$0xf] 0
        %v194 = vld [vmem:[%s181] sm:$0xff]
        %v195 = vld [vmem:[%s181 + $0x8] sm:$0xff]
        %v196 = vld [vmem:[%s181 + $0x10] sm:$0xff]
        %v197 = vld [vmem:[%s181 + $0x18] sm:$0xff]
        %v198 = vpack.c.bf16 %v195, %v194
        %v199 = vpack.c.bf16 %v197, %v196
        %v202 = vunpack.c.l.b16 %v198
        %v203 = vunpack.c.h.b16 %v198
        %v204 = vunpack.c.l.b16 %v199
        %v205 = vunpack.c.h.b16 %v199
        %v206 = vpack.c.b16 %v202, %v202
        %v207 = vpack.c.b16 %v203, %v203
        %v208 = vpack.c.b16 %v204, %v204
        %v209 = vpack.c.b16 %v205, %v205
        %vm214 = vcmask 27648
        %215 = vst.msk [vmem:[#allocation2] sm:$0xf] %vm214, %v206
        %216 = vst.msk [vmem:[#allocation2 + $0x4] sm:$0xf] %vm214, %v207
        %217 = vst.msk [vmem:[#allocation2 + $0x8] sm:$0xf] %vm214, %v208
        %218 = vst.msk [vmem:[#allocation2 + $0xc] sm:$0xf] %vm214, %v209
        %v219 = vld [vmem:[#allocation2] sm:$0xf]
        %v220 = vld [vmem:[#allocation2 + $0x4] sm:$0xf]
        %v221 = vld [vmem:[#allocation2 + $0x8] sm:$0xf]
        %v222 = vld [vmem:[#allocation2 + $0xc] sm:$0xf]
        %v223 = vld [vmem:[#allocation3] sm:$0xf]
        %v224 = vld [vmem:[#allocation3 + $0xc] sm:$0xf]
        %v225 = vld [vmem:[#allocation3 + $0x18] sm:$0xf]
        %v226 = vld [vmem:[#allocation3 + $0x24] sm:$0xf]
        %v227 = vld [vmem:[#allocation3 + $0x30] sm:$0xf]
        %v228 = vld [vmem:[#allocation3 + $0x3c] sm:$0xf]
        %v229 = vld [vmem:[#allocation3 + $0x48] sm:$0xf]
        %v230 = vld [vmem:[#allocation3 + $0x54] sm:$0xf]
        %v231 = vld [vmem:[#allocation3 + $0x60] sm:$0xf]
        %v232 = vld [vmem:[#allocation3 + $0x6c] sm:$0xf]
        %v233 = vld [vmem:[#allocation3 + $0x78] sm:$0xf]
        %v234 = vld [vmem:[#allocation3 + $0x84] sm:$0xf]
        %v235 = vld [vmem:[#allocation3 + $0x90] sm:$0xf]
        %v236 = vld [vmem:[#allocation3 + $0x9c] sm:$0xf]
        %v237 = vld [vmem:[#allocation3 + $0xa8] sm:$0xf]
        %v238 = vld [vmem:[#allocation3 + $0xb4] sm:$0xf]
        %v239 = vld [vmem:[%s2] sm:$0x1]
        %v241 = vlaneseq
        %v242 = vshrl.u32 %v241, 7
        %v243 = vsub.s32 0, %v242
        %v244 = vrot.slane %v239, %v243
        %v250 = vunpack.c.l.b16 %v219
        %v251 = vunpack.c.l.b16 %v220
        %v252 = vunpack.c.l.b16 %v221
        %v253 = vunpack.c.l.b16 %v222
        %v254 = vpack.c.b16 %v251, %v250
        %v255 = vpack.c.b16 %v253, %v252
        %v274 = vunpack.c.l.b16 %v223
        %v275 = vunpack.c.l.b16 %v224
        %v276 = vunpack.c.l.b16 %v225
        %v277 = vunpack.c.l.b16 %v226
        %v278 = vunpack.c.l.b16 %v227
        %v279 = vunpack.c.l.b16 %v228
        %v280 = vunpack.c.l.b16 %v229
        %v281 = vunpack.c.l.b16 %v230
        %v282 = vunpack.c.l.b16 %v231
        %v283 = vunpack.c.l.b16 %v232
        %v284 = vunpack.c.l.b16 %v233
        %v285 = vunpack.c.l.b16 %v234
        %v286 = vunpack.c.l.b16 %v235
        %v287 = vunpack.c.l.b16 %v236
        %v288 = vunpack.c.l.b16 %v237
        %v289 = vunpack.c.l.b16 %v238
        %v290 = vpack.c.b16 %v275, %v274
        %v291 = vpack.c.b16 %v277, %v276
        %v292 = vpack.c.b16 %v279, %v278
        %v293 = vpack.c.b16 %v281, %v280
        %v294 = vpack.c.b16 %v283, %v282
        %v295 = vpack.c.b16 %v285, %v284
        %v296 = vpack.c.b16 %v287, %v286
        %v297 = vpack.c.b16 %v289, %v288
        %306 = vmatprep.subr.bf16.mxu0 0
        %307 = vmatpush1.bf16.msra.mxu0 %v297
        %308 = vmatprep.subr.bf16.mxu0 0
        %309 = vmatpush1.bf16.msra.mxu0 %v296
        %310 = vmatprep.subr.bf16.mxu0 0
        %311 = vmatpush1.bf16.msra.mxu0 %v295
        %312 = vmatprep.subr.bf16.mxu0 0
        %313 = vmatpush1.bf16.msra.mxu0 %v294
        %314 = vmatprep.subr.bf16.mxu0 0
        %315 = vmatpush1.bf16.msra.mxu0 %v293
        %316 = vmatprep.subr.bf16.mxu0 0
        %317 = vmatpush1.bf16.msra.mxu0 %v292
        %318 = vmatprep.subr.bf16.mxu0 0
        %319 = vmatpush1.bf16.msra.mxu0 %v291
        %320 = vmatprep.subr.bf16.mxu0 0
        %321 = vmatpush1.bf16.msra.mxu0 %v290
        %322 = vmatprep.subr.bf16.mxu0 0
        %323 = vmatpush2.bf16.msra.mxu0 0
        %324 = vmatprep.subr.bf16.mxu0 0
        %325 = vmatpush2.bf16.msra.mxu0 0
        %326 = vmatprep.subr.bf16.mxu0 0
        %327 = vmatpush2.bf16.msra.mxu0 0
        %328 = vmatprep.subr.bf16.mxu0 0
        %329 = vmatpush2.bf16.msra.mxu0 0
        %330 = vmatprep.subr.bf16.mxu0 0
        %331 = vmatpush2.bf16.msra.mxu0 0
        %332 = vmatprep.subr.bf16.mxu0 0
        %333 = vmatpush2.bf16.msra.mxu0 0
        %334 = vmatprep.subr.bf16.mxu0 0
        %335 = vmatpush2.bf16.msra.mxu0 0
        %336 = vmatprep.subr.bf16.mxu0 0
        %337 = vmatpush2.bf16.msra.mxu0 0
        %338 = vmatprep.mubr.bf16.mxu0 0
        %339 = vmatmul.mubr.bf16.gmra.mxu0 %v254
        %v340 = vpop.f32.mrf.mxu0
        %v341 = vadd.f32 %v244, %v340
        %v342 = vpop.f32.mrf.mxu0
        %v343 = vpop.f32.mrf.mxu0
        %v344 = vadd.f32 %v244, %v343
        %v345 = vpop.f32.mrf.mxu0
        %346 = vmatprep.mubr.bf16.mxu0 0
        %347 = vmatmul.mubr.bf16.gmra.mxu0 %v255
        %v348 = vpop.f32.mrf.mxu0
        %v349 = vadd.f32 %v244, %v348
        %v350 = vpop.f32.mrf.mxu0
        %v351 = vpop.f32.mrf.mxu0
        %v352 = vadd.f32 %v244, %v351
        %v353 = vpop.f32.mrf.mxu0
        %354 = vdwg.mxu0
        %v355 = vmax.f32 %v341, 0.0
        %v356 = vmax.f32 %v344, 0.0
        %v357 = vmax.f32 %v349, 0.0
        %v358 = vmax.f32 %v352, 0.0
        %v359 = vpack.c.bf16 %v356, %v355
        %v360 = vpack.c.bf16 %v358, %v357
        %v361 = vld [vmem:[#allocation3 + $0x4] sm:$0xf]
        %v362 = vld [vmem:[#allocation3 + $0x10] sm:$0xf]
        %v363 = vld [vmem:[#allocation3 + $0x1c] sm:$0xf]
        %v364 = vld [vmem:[#allocation3 + $0x28] sm:$0xf]
        %v365 = vld [vmem:[#allocation3 + $0x34] sm:$0xf]
        %v366 = vld [vmem:[#allocation3 + $0x40] sm:$0xf]
        %v367 = vld [vmem:[#allocation3 + $0x4c] sm:$0xf]
        %v368 = vld [vmem:[#allocation3 + $0x58] sm:$0xf]
        %v369 = vld [vmem:[#allocation3 + $0x64] sm:$0xf]
        %v370 = vld [vmem:[#allocation3 + $0x70] sm:$0xf]
        %v371 = vld [vmem:[#allocation3 + $0x7c] sm:$0xf]
        %v372 = vld [vmem:[#allocation3 + $0x88] sm:$0xf]
        %v373 = vld [vmem:[#allocation3 + $0x94] sm:$0xf]
        %v374 = vld [vmem:[#allocation3 + $0xa0] sm:$0xf]
        %v375 = vld [vmem:[#allocation3 + $0xac] sm:$0xf]
        %v376 = vld [vmem:[#allocation3 + $0xb8] sm:$0xf]
        %v377 = vld [vmem:[%s2 + $0x1] sm:$0x1]
        %v379 = vlaneseq
        %v380 = vshrl.u32 %v379, 7
        %v381 = vsub.s32 0, %v380
        %v382 = vrot.slane %v377, %v381
        %v400 = vunpack.c.l.b16 %v361
        %v401 = vunpack.c.l.b16 %v362
        %v402 = vunpack.c.l.b16 %v363
        %v403 = vunpack.c.l.b16 %v364
        %v404 = vunpack.c.l.b16 %v365
        %v405 = vunpack.c.l.b16 %v366
        %v406 = vunpack.c.l.b16 %v367
        %v407 = vunpack.c.l.b16 %v368
        %v408 = vunpack.c.l.b16 %v369
        %v409 = vunpack.c.l.b16 %v370
        %v410 = vunpack.c.l.b16 %v371
        %v411 = vunpack.c.l.b16 %v372
        %v412 = vunpack.c.l.b16 %v373
        %v413 = vunpack.c.l.b16 %v374
        %v414 = vunpack.c.l.b16 %v375
        %v415 = vunpack.c.l.b16 %v376
        %v416 = vpack.c.b16 %v401, %v400
        %v417 = vpack.c.b16 %v403, %v402
        %v418 = vpack.c.b16 %v405, %v404
        %v419 = vpack.c.b16 %v407, %v406
        %v420 = vpack.c.b16 %v409, %v408
        %v421 = vpack.c.b16 %v411, %v410
        %v422 = vpack.c.b16 %v413, %v412
        %v423 = vpack.c.b16 %v415, %v414
        %432 = vmatprep.subr.bf16.mxu0 0
        %433 = vmatpush1.bf16.msra.mxu0 %v423
        %434 = vmatprep.subr.bf16.mxu0 0
        %435 = vmatpush1.bf16.msra.mxu0 %v422
        %436 = vmatprep.subr.bf16.mxu0 0
        %437 = vmatpush1.bf16.msra.mxu0 %v421
        %438 = vmatprep.subr.bf16.mxu0 0
        %439 = vmatpush1.bf16.msra.mxu0 %v420
        %440 = vmatprep.subr.bf16.mxu0 0
        %441 = vmatpush1.bf16.msra.mxu0 %v419
        %442 = vmatprep.subr.bf16.mxu0 0
        %443 = vmatpush1.bf16.msra.mxu0 %v418
        %444 = vmatprep.subr.bf16.mxu0 0
        %445 = vmatpush1.bf16.msra.mxu0 %v417
        %446 = vmatprep.subr.bf16.mxu0 0
        %447 = vmatpush1.bf16.msra.mxu0 %v416
        %448 = vmatprep.subr.bf16.mxu0 0
        %449 = vmatpush2.bf16.msra.mxu0 0
        %450 = vmatprep.subr.bf16.mxu0 0
        %451 = vmatpush2.bf16.msra.mxu0 0
        %452 = vmatprep.subr.bf16.mxu0 0
        %453 = vmatpush2.bf16.msra.mxu0 0
        %454 = vmatprep.subr.bf16.mxu0 0
        %455 = vmatpush2.bf16.msra.mxu0 0
        %456 = vmatprep.subr.bf16.mxu0 0
        %457 = vmatpush2.bf16.msra.mxu0 0
        %458 = vmatprep.subr.bf16.mxu0 0
        %459 = vmatpush2.bf16.msra.mxu0 0
        %460 = vmatprep.subr.bf16.mxu0 0
        %461 = vmatpush2.bf16.msra.mxu0 0
        %462 = vmatprep.subr.bf16.mxu0 0
        %463 = vmatpush2.bf16.msra.mxu0 0
        %464 = vmatprep.mubr.bf16.mxu0 0
        %465 = vmatmul.mubr.bf16.gmra.mxu0 %v359
        %v466 = vpop.f32.mrf.mxu0
        %v467 = vadd.f32 %v382, %v466
        %v468 = vpop.f32.mrf.mxu0
        %v469 = vpop.f32.mrf.mxu0
        %v470 = vadd.f32 %v382, %v469
        %v471 = vpop.f32.mrf.mxu0
        %472 = vmatprep.mubr.bf16.mxu0 0
        %473 = vmatmul.mubr.bf16.gmra.mxu0 %v360
        %v474 = vpop.f32.mrf.mxu0
        %v475 = vadd.f32 %v382, %v474
        %v476 = vpop.f32.mrf.mxu0
        %v477 = vpop.f32.mrf.mxu0
        %v478 = vadd.f32 %v382, %v477
        %v479 = vpop.f32.mrf.mxu0
        %480 = vdwg.mxu0
        %v481 = vmax.f32 %v467, 0.0
        %v482 = vmax.f32 %v470, 0.0
        %v483 = vmax.f32 %v475, 0.0
        %v484 = vmax.f32 %v478, 0.0
        %v485 = vpack.c.bf16 %v482, %v481
        %v486 = vpack.c.bf16 %v484, %v483
        %v487 = vld [vmem:[#allocation3 + $0x8] sm:$0xf]
        %v488 = vld [vmem:[#allocation3 + $0x14] sm:$0xf]
        %v489 = vld [vmem:[#allocation3 + $0x20] sm:$0xf]
        %v490 = vld [vmem:[#allocation3 + $0x2c] sm:$0xf]
        %v491 = vld [vmem:[#allocation3 + $0x38] sm:$0xf]
        %v492 = vld [vmem:[#allocation3 + $0x44] sm:$0xf]
        %v493 = vld [vmem:[#allocation3 + $0x50] sm:$0xf]
        %v494 = vld [vmem:[#allocation3 + $0x5c] sm:$0xf]
        %v495 = vld [vmem:[#allocation3 + $0x68] sm:$0xf]
        %v496 = vld [vmem:[#allocation3 + $0x74] sm:$0xf]
        %v497 = vld [vmem:[#allocation3 + $0x80] sm:$0xf]
        %v498 = vld [vmem:[#allocation3 + $0x8c] sm:$0xf]
        %v499 = vld [vmem:[#allocation3 + $0x98] sm:$0xf]
        %v500 = vld [vmem:[#allocation3 + $0xa4] sm:$0xf]
        %v501 = vld [vmem:[#allocation3 + $0xb0] sm:$0xf]
        %v502 = vld [vmem:[#allocation3 + $0xbc] sm:$0xf]
        %v503 = vld [vmem:[%s2 + $0x2] sm:$0x1]
        %v505 = vlaneseq
        %v506 = vshrl.u32 %v505, 7
        %v507 = vsub.s32 0, %v506
        %v508 = vrot.slane %v503, %v507
        %v526 = vunpack.c.l.b16 %v487
        %v527 = vunpack.c.l.b16 %v488
        %v528 = vunpack.c.l.b16 %v489
        %v529 = vunpack.c.l.b16 %v490
        %v530 = vunpack.c.l.b16 %v491
        %v531 = vunpack.c.l.b16 %v492
        %v532 = vunpack.c.l.b16 %v493
        %v533 = vunpack.c.l.b16 %v494
        %v534 = vunpack.c.l.b16 %v495
        %v535 = vunpack.c.l.b16 %v496
        %v536 = vunpack.c.l.b16 %v497
        %v537 = vunpack.c.l.b16 %v498
        %v538 = vunpack.c.l.b16 %v499
        %v539 = vunpack.c.l.b16 %v500
        %v540 = vunpack.c.l.b16 %v501
        %v541 = vunpack.c.l.b16 %v502
        %v542 = vpack.c.b16 %v527, %v526
        %v543 = vpack.c.b16 %v529, %v528
        %v544 = vpack.c.b16 %v531, %v530
        %v545 = vpack.c.b16 %v533, %v532
        %v546 = vpack.c.b16 %v535, %v534
        %v547 = vpack.c.b16 %v537, %v536
        %v548 = vpack.c.b16 %v539, %v538
        %v549 = vpack.c.b16 %v541, %v540
        %558 = vmatprep.subr.bf16.mxu0 0
        %559 = vmatpush1.bf16.msra.mxu0 %v549
        %560 = vmatprep.subr.bf16.mxu0 0
        %561 = vmatpush1.bf16.msra.mxu0 %v548
        %562 = vmatprep.subr.bf16.mxu0 0
        %563 = vmatpush1.bf16.msra.mxu0 %v547
        %564 = vmatprep.subr.bf16.mxu0 0
        %565 = vmatpush1.bf16.msra.mxu0 %v546
        %566 = vmatprep.subr.bf16.mxu0 0
        %567 = vmatpush1.bf16.msra.mxu0 %v545
        %568 = vmatprep.subr.bf16.mxu0 0
        %569 = vmatpush1.bf16.msra.mxu0 %v544
        %570 = vmatprep.subr.bf16.mxu0 0
        %571 = vmatpush1.bf16.msra.mxu0 %v543
        %572 = vmatprep.subr.bf16.mxu0 0
        %573 = vmatpush1.bf16.msra.mxu0 %v542
        %574 = vmatprep.subr.bf16.mxu0 0
        %575 = vmatpush2.bf16.msra.mxu0 0
        %576 = vmatprep.subr.bf16.mxu0 0
        %577 = vmatpush2.bf16.msra.mxu0 0
        %578 = vmatprep.subr.bf16.mxu0 0
        %579 = vmatpush2.bf16.msra.mxu0 0
        %580 = vmatprep.subr.bf16.mxu0 0
        %581 = vmatpush2.bf16.msra.mxu0 0
        %582 = vmatprep.subr.bf16.mxu0 0
        %583 = vmatpush2.bf16.msra.mxu0 0
        %584 = vmatprep.subr.bf16.mxu0 0
        %585 = vmatpush2.bf16.msra.mxu0 0
        %586 = vmatprep.subr.bf16.mxu0 0
        %587 = vmatpush2.bf16.msra.mxu0 0
        %588 = vmatprep.subr.bf16.mxu0 0
        %589 = vmatpush2.bf16.msra.mxu0 0
        %590 = vmatprep.mubr.bf16.mxu0 0
        %591 = vmatmul.mubr.bf16.gmra.mxu0 %v485
        %v592 = vpop.f32.mrf.mxu0
        %v593 = vadd.f32 %v508, %v592
        %v594 = vpop.f32.mrf.mxu0
        %v595 = vpop.f32.mrf.mxu0
        %v596 = vadd.f32 %v508, %v595
        %v597 = vpop.f32.mrf.mxu0
        %598 = vmatprep.mubr.bf16.mxu0 0
        %599 = vmatmul.mubr.bf16.gmra.mxu0 %v486
        %v600 = vpop.f32.mrf.mxu0
        %v601 = vadd.f32 %v508, %v600
        %v602 = vpop.f32.mrf.mxu0
        %v603 = vpop.f32.mrf.mxu0
        %v604 = vadd.f32 %v508, %v603
        %v605 = vpop.f32.mrf.mxu0
        %606 = vdwg.mxu0
        %vm607 = vcmask 15360
        %608 = vst.msk [vmem:[%s187] sm:$0xff] %vm607, %v593
        %609 = vst.msk [vmem:[%s187 + $0x8] sm:$0xff] %vm607, %v596
        %610 = vst.msk [vmem:[%s187 + $0x10] sm:$0xff] %vm607, %v601
        %611 = vst.msk [vmem:[%s187 + $0x18] sm:$0xff] %vm607, %v604
        %s612 = smul.u32 4, %s15
        %p613 = scmp.lt.s32.totalorder %s612, 7
        %s614 = scalar_select %p613, %s612, 7
        %s615 = smul.addr %s614, 8
        %s616 = scalar_lea.vmem %s3, %s615
        // Predicated region
        $region37: #{dqn_forward.1} parent=31 // pred_check
          %p617 = pneg %p101
        $region38: #{dqn_forward.1} parent=31 // pred_check_branch
          %619 = sbr.rel (%p617) target = $region40
        $region39: #{dqn_forward.1} parent=31 // pred_region
          %s620 = smul.u32 4, %s15
        $region40: #{dqn_forward.1} parent=31 // pred_fallthru
          _
      $region32: #{dqn_forward.1} parent=5 // pred_fallthru
        _
      %p621 = scmp.le.s32.totalorder 2, %s10
      // Predicated region
      $region41: #{dqn_forward.1} parent=5 // pred_check
        %p622 = pneg %p621
      $region42: #{dqn_forward.1} parent=5 // pred_check_branch
        %624 = sbr.rel (%p622) target = $region44
      $region43: #{dqn_forward.1} parent=5 // pred_region
        %s625 = ssub.s32 %s10, 2
        // Predicated region
        $region45: #{dqn_forward.1} parent=43 // pred_check
          %p626 = pneg %p107
        $region46: #{dqn_forward.1} parent=43 // pred_check_branch
          %628 = sbr.rel (%p626) target = $region48
        $region47: #{dqn_forward.1} parent=43 // pred_region
          %s629 = smul.u32 4, %s16
          %p630 = scmp.lt.s32.totalorder %s629, 7
          %s631 = scalar_select %p630, %s629, 7
          %s632 = smul.addr %s631, 8
          %s633 = scalar_lea.vmem %s3, %s632
        $region48: #{dqn_forward.1} parent=43 // pred_fallthru
          _
      $region44: #{dqn_forward.1} parent=5 // pred_fallthru
        _
    $region6: #{dqn_forward.1} parent=1 // loop_footer
      %s14 = sadd.s32 1, %s10
    $region7: #{dqn_forward.1} parent=1 // loop_footer_branch
      %9 = sbr.rel target = $region3
    $region8: #{dqn_forward.1} parent=1 // loop_exit
      _
    %634 = vsyncpa [#allocation4], 1
    %s635 = scalar_lea.sflag [#allocation4], 1
    %636 = vsyncpa %s635, 1

</llo_original>
